<compile_context>
chip_gen: v7x
topology: tpu7x:2x2x1
jax: 0.10.0
libtpu: 0.0.40
codegen_flags: <defaults>
</compile_context>

<pallas_src>
import functools

import jax
import jax.numpy as jnp
from jax import lax
from jax.experimental import pallas as pl
from jax.experimental.pallas import tpu as pltpu


# ---------------------------------------------------------------------------
# Pallas kernel: one grid step == one sample
# ---------------------------------------------------------------------------
def _downsample_kernel(x_ref, w_ref, b_ref, o_ref, *,
                       th, wo, ho, cin4, cout, with_norm, slope, eps, unroll):
    """x_ref: (Hs, Ws, 4*Cin) bf16 s2d sample (resident);
       w_ref: (16*Cin, Cout) bf16 fused conv weight (resident);
       b_ref: (1, Cout) f32 bias (resident);
       o_ref: (Ho*Wo, Cout) bf16 whole-sample output block (also used as the z-cache)."""
    n_tiles = ho // th
    m = th * wo
    inv_npix = 1.0 / float(ho * wo)

    def conv_tile(r):
        row0 = r * th
        taps = []
        for di in range(2):
            for dj in range(2):
                a = x_ref[pl.ds(row0 + di, th), pl.ds(dj, wo), :]   # (th, wo, 4*Cin)
                taps.append(a.reshape(m, cin4))
        lhs = jnp.concatenate(taps, axis=-1)                        # (m, 16*Cin)
        z = jnp.dot(lhs, w_ref[...], preferred_element_type=jnp.float32)
        z = z + b_ref[...]                                          # (1, Cout) broadcast
        return jnp.maximum(z, slope * z)                            # LeakyReLU (slope 0.01)

    def out_rows(r):
        return pl.ds(pl.multiple_of(r * m, m), m)

    if not with_norm:
        # is_bn=False path: conv + LeakyReLU only.
        def body(r, carry):
            o_ref[out_rows(r), :] = conv_tile(r).astype(o_ref.dtype)
            return carry
        lax.fori_loop(0, n_tiles, body, 0, unroll=unroll)
        return

    # Pass A: conv + bias + LeakyReLU, cache bf16 result in o_ref, accumulate channel sums.
    def body_sum(r, s):
        zb = conv_tile(r).astype(o_ref.dtype)
        o_ref[out_rows(r), :] = zb
        return s + jnp.sum(zb.astype(jnp.float32), axis=0, keepdims=True)

    zero = jnp.zeros((1, cout), jnp.float32)
    s = lax.fori_loop(0, n_tiles, body_sum, zero, unroll=unroll)
    mean = s * inv_npix

    # Pass B: variance from (z - mean)^2 on the VMEM-cached activation (no cancellation).
    def body_var(r, q):
        d = o_ref[out_rows(r), :].astype(jnp.float32) - mean
        return q + jnp.sum(d * d, axis=0, keepdims=True)

    q = lax.fori_loop(0, n_tiles, body_var, zero, unroll=unroll)
    scale = lax.rsqrt(q * inv_npix + eps)

    # Pass C: normalize the cached activation in place (f32 math, bf16 store).
    def body_norm(r, carry):
        y = o_ref[out_rows(r), :].astype(jnp.float32)
        o_ref[out_rows(r), :] = ((y - mean) * scale).astype(o_ref.dtype)
        return carry

    lax.fori_loop(0, n_tiles, body_norm, 0, unroll=unroll)


# ---------------------------------------------------------------------------
# Wrapper
# ---------------------------------------------------------------------------
def _round_up(x, mult):
    return (x + mult - 1) // mult * mult


def _pick_row_block(ho, wo, cin16, cout, budget_bytes=6 << 20):
    """Largest divisor of Ho whose per-tile matmul temporaries stay under ~6 MiB."""
    best = 1
    for t in range(1, ho + 1):
        if ho % t:
            continue
        m = t * wo
        tile_bytes = m * (cin16 * 2 + cout * 4 + cout * 2)   # lhs bf16 + z f32 + zb bf16
        if tile_bytes <= budget_bytes:
            best = t
    return best


@functools.partial(jax.jit, static_argnames=("is_bn", "row_block", "slope", "eps"))
def downsample_forward(x, weight, bias, *, is_bn=True, row_block=None,
                       slope=0.01, eps=1e-5):
    """x: (N, Cin, H, W) f32 NCHW; weight: (Cout, Cin, 3, 3); bias: (Cout,).
    Returns (N, Cout, H//2, W//2) in bfloat16 (normalization math is f32)."""
    N, Cin, H, W = x.shape
    Cout = weight.shape[0]
    assert weight.shape == (Cout, Cin, 3, 3)
    assert H % 2 == 0 and W % 2 == 0, "even spatial dims expected for stride-2/pad-1"
    Ho, Wo = H // 2, W // 2
    Hs, Ws = Ho + 1, Wo + 1
    C4, C16 = 4 * Cin, 16 * Cin

    # ---- boundary layout plumbing (once, no HBM im2col expansion) --------------------
    # NCHW -> NHWC -> zero-pad(1) -> s2d: channel index = (ph*2 + pw)*Cin + c
    xt = jnp.transpose(x, (0, 2, 3, 1))
    xp = jnp.pad(xt, ((0, 0), (1, 1), (1, 1), (0, 0)))
    xs = xp.reshape(N, Hs, 2, Ws, 2, Cin).transpose(0, 1, 3, 2, 4, 5)
    xs = xs.reshape(N, Hs, Ws, C4).astype(jnp.bfloat16)

    # OIHW weight -> fused (16*Cin, Cout); row index = (2*di+dj)*4*Cin + (2*ph+pw)*Cin + ci
    # (taps falling outside the 3x3 window are zero via the (0,1) pad).
    wp = jnp.pad(weight, ((0, 0), (0, 0), (0, 1), (0, 1)))          # (Cout, Cin, 4, 4)
    wg = wp.reshape(Cout, Cin, 2, 2, 2, 2).transpose(2, 4, 3, 5, 1, 0)
    wg = wg.reshape(C16, Cout).astype(jnp.bfloat16)
    b2 = bias.reshape(1, Cout).astype(jnp.float32)

    if row_block is None:
        row_block = _pick_row_block(Ho, Wo, C16, Cout)
    assert Ho % row_block == 0, (Ho, row_block)
    n_tiles = Ho // row_block
    unroll = n_tiles <= 8

    # ---- VMEM footprint estimate -> generation-aware vmem limit ----------------------
    in_bytes = Hs * _round_up(Ws, 8) * _round_up(C4, 128) * 2          # resident sample
    out_bytes = _round_up(Ho * Wo, 8) * _round_up(Cout, 128) * 2       # whole-sample out
    w_bytes = _round_up(C16, 8) * _round_up(Cout, 128) * 2
    m = row_block * Wo
    tmp_bytes = _round_up(m, 8) * (_round_up(C16, 128) * 2 + _round_up(Cout, 128) * 6)
    est = 2 * (in_bytes + out_bytes) + 2 * w_bytes + 4 * tmp_bytes + (1 << 20)
    vmem_limit = int(min(max(est, 32 << 20), 56 << 20))   # >= v5e's 16 MiB default, v7x-safe

    kern = functools.partial(
        _downsample_kernel, th=row_block, wo=Wo, ho=Ho, cin4=C4, cout=Cout,
        with_norm=is_bn, slope=slope, eps=eps, unroll=unroll)

    out = pl.pallas_call(
        kern,
        out_shape=jax.ShapeDtypeStruct((N, Ho * Wo, Cout), jnp.bfloat16),
        grid_spec=pltpu.PrefetchScalarGridSpec(
            num_scalar_prefetch=0,
            grid=(N,),
            in_specs=[
                # full per-sample s2d image (resident for the whole grid step)
                pl.BlockSpec((pl.Squeezed(), Hs, Ws, C4), lambda n: (n, 0, 0, 0)),
                # fused weight / bias: constant index maps -> stay resident in VMEM
                pl.BlockSpec((C16, Cout), lambda n: (0, 0)),
                pl.BlockSpec((1, Cout), lambda n: (0, 0)),
            ],
            out_specs=pl.BlockSpec((pl.Squeezed(), Ho * Wo, Cout), lambda n: (n, 0, 0)),
        ),
        compiler_params=pltpu.CompilerParams(
            dimension_semantics=("parallel",),
            vmem_limit_bytes=vmem_limit),
    )(xs, wg, b2)

    # channel-last -> NCHW only at the model boundary (keep bf16 between layers).
    return out.reshape(N, Ho, Wo, Cout).transpose(0, 3, 1, 2)


# ---------------------------------------------------------------------------
# Pure-JAX reference (bf16-rounded inputs, f32 math) for correctness check
# ---------------------------------------------------------------------------
def _ref_forward(x, weight, bias, is_bn=True):
    xq = x.astype(jnp.bfloat16).astype(jnp.float32)
    wq = weight.astype(jnp.bfloat16).astype(jnp.float32)
    y = jax.lax.conv_general_dilated(
        xq, wq, (2, 2), [(1, 1), (1, 1)],
        dimension_numbers=("NCHW", "OIHW", "NCHW"))
    y = y + bias[None, :, None, None]
    y = jnp.where(y > 0, y, 0.01 * y)
    if is_bn:
        mmean = y.mean(axis=(2, 3), keepdims=True)
        var = ((y - mmean) ** 2).mean(axis=(2, 3), keepdims=True)
        y = (y - mmean) * jax.lax.rsqrt(var + 1e-5)
    return y


# ---------------------------------------------------------------------------
# Main
# ---------------------------------------------------------------------------
if __name__ == "__main__":
    key = jax.random.PRNGKey(0)
    kx, kw, kb = jax.random.split(key, 3)

    N, Cin, H, W, Cout = 2, 4, 16, 16, 128
    bound = (Cin * 9) ** -0.5
    x = jax.random.normal(kx, (N, Cin, H, W), dtype=jnp.float32)
    w = jax.random.uniform(kw, (Cout, Cin, 3, 3), jnp.float32, -bound, bound)
    b = jax.random.uniform(kb, (Cout,), jnp.float32, -bound, bound)

    # Default forward (conv + LeakyReLU + InstanceNorm), auto row tiling (single tile).
    out = jax.block_until_ready(downsample_forward(x, w, b))
    ref = jax.block_until_ready(_ref_forward(x, w, b))
    assert out.shape == (N, Cout, H // 2, W // 2), out.shape
    assert jnp.allclose(out.astype(jnp.float32), ref, rtol=2e-2, atol=2e-2), \
        float(jnp.max(jnp.abs(out.astype(jnp.float32) - ref)))

    # Force several in-kernel row tiles so the tiled conv/stats/normalize loops run.
    out_mt = jax.block_until_ready(downsample_forward(x, w, b, row_block=2))
    assert jnp.allclose(out_mt.astype(jnp.float32), ref, rtol=2e-2, atol=2e-2), \
        float(jnp.max(jnp.abs(out_mt.astype(jnp.float32) - ref)))

    # is_bn=False path (conv + LeakyReLU only).
    out2 = jax.block_until_ready(downsample_forward(x, w, b, is_bn=False))
    ref2 = _ref_forward(x, w, b, is_bn=False)
    assert jnp.allclose(out2.astype(jnp.float32), ref2, rtol=2e-2, atol=2e-2), \
        float(jnp.max(jnp.abs(out2.astype(jnp.float32) - ref2)))

    print("KERNEL_OK")
</pallas_src>

<mosaic_0001>
module attributes {stable_mosaic.version = 11 : i64} {
  func.func @_downsample_kernel(%arg0: i32, %arg1: memref<1x9x9x16xbf16, #tpu.memory_space<vmem>>, %arg2: memref<64x128xbf16, #tpu.memory_space<vmem>>, %arg3: memref<1x128xf32, #tpu.memory_space<vmem>>, %arg4: memref<1x64x128xbf16, #tpu.memory_space<vmem>>) attributes {dimension_semantics = [#tpu.dimension_semantics<parallel>], iteration_bounds = array<i64: 2>, scalar_prefetch = 0 : i64, scratch_operands = 0 : i64, tpu.core_type = #tpu.core_type<tc>, window_params = [{transform_indices = @transform_0, window_bounds = array<i64: 1, 9, 9, 16>}, {pipeline_mode = #tpu.pipeline_mode<synchronous>, transform_indices = @transform_1, window_bounds = array<i64: 64, 128>}, {pipeline_mode = #tpu.pipeline_mode<synchronous>, transform_indices = @transform_2, window_bounds = array<i64: 1, 128>}, {transform_indices = @transform_3, window_bounds = array<i64: 1, 64, 128>}]} {
    %cst = arith.constant 0.000000e+00 : f32
    %0 = vector.broadcast %cst : f32 to vector<1x128xf32>
    %c0_i32 = arith.constant 0 : i32
    %c8_i32 = arith.constant 8 : i32
    %1 = arith.muli %c0_i32, %c8_i32 : i32
    %c0_i32_0 = arith.constant 0 : i32
    %2 = arith.addi %1, %c0_i32_0 : i32
    %c0 = arith.constant 0 : index
    %3 = arith.index_cast %2 : i32 to index
    %c0_1 = arith.constant 0 : index
    %c0_2 = arith.constant 0 : index
    %4 = vector.load %arg1[%c0, %3, %c0_1, %c0_2] : memref<1x9x9x16xbf16, #tpu.memory_space<vmem>>, vector<1x8x8x16xbf16>
    %5 = vector.shape_cast %4 : vector<1x8x8x16xbf16> to vector<8x8x16xbf16>
    %6 = vector.shape_cast %5 : vector<8x8x16xbf16> to vector<64x16xbf16>
    %c0_i32_3 = arith.constant 0 : i32
    %7 = arith.addi %1, %c0_i32_3 : i32
    %c0_4 = arith.constant 0 : index
    %8 = arith.index_cast %7 : i32 to index
    %c1 = arith.constant 1 : index
    %c0_5 = arith.constant 0 : index
    %9 = vector.load %arg1[%c0_4, %8, %c1, %c0_5] : memref<1x9x9x16xbf16, #tpu.memory_space<vmem>>, vector<1x8x8x16xbf16>
    %10 = vector.shape_cast %9 : vector<1x8x8x16xbf16> to vector<8x8x16xbf16>
    %11 = vector.shape_cast %10 : vector<8x8x16xbf16> to vector<64x16xbf16>
    %c1_i32 = arith.constant 1 : i32
    %12 = arith.addi %1, %c1_i32 : i32
    %c0_6 = arith.constant 0 : index
    %13 = arith.index_cast %12 : i32 to index
    %c0_7 = arith.constant 0 : index
    %c0_8 = arith.constant 0 : index
    %14 = vector.load %arg1[%c0_6, %13, %c0_7, %c0_8] : memref<1x9x9x16xbf16, #tpu.memory_space<vmem>>, vector<1x8x8x16xbf16>
    %15 = vector.shape_cast %14 : vector<1x8x8x16xbf16> to vector<8x8x16xbf16>
    %16 = vector.shape_cast %15 : vector<8x8x16xbf16> to vector<64x16xbf16>
    %c1_i32_9 = arith.constant 1 : i32
    %17 = arith.addi %1, %c1_i32_9 : i32
    %c0_10 = arith.constant 0 : index
    %18 = arith.index_cast %17 : i32 to index
    %c1_11 = arith.constant 1 : index
    %c0_12 = arith.constant 0 : index
    %19 = vector.load %arg1[%c0_10, %18, %c1_11, %c0_12] : memref<1x9x9x16xbf16, #tpu.memory_space<vmem>>, vector<1x8x8x16xbf16>
    %20 = vector.shape_cast %19 : vector<1x8x8x16xbf16> to vector<8x8x16xbf16>
    %21 = vector.shape_cast %20 : vector<8x8x16xbf16> to vector<64x16xbf16>
    %22 = tpu.concatenate %6, %11, %16, %21 in 1 : vector<64x16xbf16>, vector<64x16xbf16>, vector<64x16xbf16>, vector<64x16xbf16> -> vector<64x64xbf16>
    %c0_13 = arith.constant 0 : index
    %c0_14 = arith.constant 0 : index
    %23 = vector.load %arg2[%c0_13, %c0_14] : memref<64x128xbf16, #tpu.memory_space<vmem>>, vector<64x128xbf16>
    %cst_15 = arith.constant dense<0.000000e+00> : vector<64x128xf32>
    %24 = tpu.matmul %22, %23, %cst_15 {dimension_numbers = #tpu.dot_dimension_numbers<[1], [0], [0], [1], [0, 0, 1, 1], [], []>} : vector<64x64xbf16>, vector<64x128xbf16>, vector<64x128xf32> -> vector<64x128xf32>
    %c0_16 = arith.constant 0 : index
    %c0_17 = arith.constant 0 : index
    %25 = vector.load %arg3[%c0_16, %c0_17] : memref<1x128xf32, #tpu.memory_space<vmem>>, vector<1x128xf32>
    %26 = vector.broadcast %25 : vector<1x128xf32> to vector<64x128xf32>
    %27 = arith.addf %24, %26 : vector<64x128xf32>
    %cst_18 = arith.constant 0.00999999977 : f32
    %28 = vector.broadcast %cst_18 : f32 to vector<64x128xf32>
    %29 = arith.mulf %28, %27 : vector<64x128xf32>
    %30 = arith.maximumf %27, %29 : vector<64x128xf32>
    %31 = arith.truncf %30 : vector<64x128xf32> to vector<64x128xbf16>
    %c64_i32 = arith.constant 64 : i32
    %32 = arith.muli %c0_i32, %c64_i32 : i32
    %33 = tpu.assume_multiple %32, 64 : i32
    %c0_19 = arith.constant 0 : index
    %34 = arith.index_cast %33 : i32 to index
    %c0_20 = arith.constant 0 : index
    %35 = vector.load %arg4[%c0_19, %34, %c0_20] : memref<1x64x128xbf16, #tpu.memory_space<vmem>>, vector<1x64x128xbf16>
    %36 = vector.shape_cast %35 : vector<1x64x128xbf16> to vector<64x128xbf16>
    %37 = vector.shape_cast %31 : vector<64x128xbf16> to vector<1x64x128xbf16>
    tpu.vector_store %arg4[%c0_19, %34, %c0_20], %37 {strides = array<i32>} : memref<1x64x128xbf16, #tpu.memory_space<vmem>>, vector<1x64x128xbf16>,
    %38 = arith.extf %31 : vector<64x128xbf16> to vector<64x128xf32>
    %cst_21 = arith.constant dense<0.000000e+00> : vector<128xf32>
    %39 = vector.multi_reduction <add>, %38, %cst_21 [0] : vector<64x128xf32> to vector<128xf32>
    %40 = vector.shape_cast %39 : vector<128xf32> to vector<1x128xf32>
    %41 = arith.addf %0, %40 : vector<1x128xf32>
    %c1_i32_22 = arith.constant 1 : i32
    %cst_23 = arith.constant 1.562500e-02 : f32
    %42 = vector.broadcast %cst_23 : f32 to vector<1x128xf32>
    %43 = arith.mulf %41, %42 : vector<1x128xf32>
    %c0_i32_24 = arith.constant 0 : i32
    %c64_i32_25 = arith.constant 64 : i32
    %44 = arith.muli %c0_i32_24, %c64_i32_25 : i32
    %45 = tpu.assume_multiple %44, 64 : i32
    %c0_26 = arith.constant 0 : index
    %46 = arith.index_cast %45 : i32 to index
    %c0_27 = arith.constant 0 : index
    %47 = vector.load %arg4[%c0_26, %46, %c0_27] : memref<1x64x128xbf16, #tpu.memory_space<vmem>>, vector<1x64x128xbf16>
    %48 = vector.shape_cast %47 : vector<1x64x128xbf16> to vector<64x128xbf16>
    %49 = arith.extf %48 : vector<64x128xbf16> to vector<64x128xf32>
    %50 = vector.broadcast %43 : vector<1x128xf32> to vector<64x128xf32>
    %51 = arith.subf %49, %50 : vector<64x128xf32>
    %52 = arith.mulf %51, %51 : vector<64x128xf32>
    %cst_28 = arith.constant dense<0.000000e+00> : vector<128xf32>
    %53 = vector.multi_reduction <add>, %52, %cst_28 [0] : vector<64x128xf32> to vector<128xf32>
    %54 = vector.shape_cast %53 : vector<128xf32> to vector<1x128xf32>
    %55 = arith.addf %0, %54 : vector<1x128xf32>
    %c1_i32_29 = arith.constant 1 : i32
    %cst_30 = arith.constant 1.562500e-02 : f32
    %56 = vector.broadcast %cst_30 : f32 to vector<1x128xf32>
    %57 = arith.mulf %55, %56 : vector<1x128xf32>
    %cst_31 = arith.constant 9.99999974E-6 : f32
    %58 = vector.broadcast %cst_31 : f32 to vector<1x128xf32>
    %59 = arith.addf %57, %58 : vector<1x128xf32>
    %60 = math.rsqrt %59 : vector<1x128xf32>
    %c0_i32_32 = arith.constant 0 : i32
    %c64_i32_33 = arith.constant 64 : i32
    %61 = arith.muli %c0_i32_32, %c64_i32_33 : i32
    %62 = tpu.assume_multiple %61, 64 : i32
    %c0_34 = arith.constant 0 : index
    %63 = arith.index_cast %62 : i32 to index
    %c0_35 = arith.constant 0 : index
    %64 = vector.load %arg4[%c0_34, %63, %c0_35] : memref<1x64x128xbf16, #tpu.memory_space<vmem>>, vector<1x64x128xbf16>
    %65 = vector.shape_cast %64 : vector<1x64x128xbf16> to vector<64x128xbf16>
    %66 = arith.extf %65 : vector<64x128xbf16> to vector<64x128xf32>
    %67 = vector.broadcast %43 : vector<1x128xf32> to vector<64x128xf32>
    %68 = arith.subf %66, %67 : vector<64x128xf32>
    %69 = vector.broadcast %60 : vector<1x128xf32> to vector<64x128xf32>
    %70 = arith.mulf %68, %69 : vector<64x128xf32>
    %71 = arith.truncf %70 : vector<64x128xf32> to vector<64x128xbf16>
    %c64_i32_36 = arith.constant 64 : i32
    %72 = arith.muli %c0_i32_32, %c64_i32_36 : i32
    %73 = tpu.assume_multiple %72, 64 : i32
    %c0_37 = arith.constant 0 : index
    %74 = arith.index_cast %73 : i32 to index
    %c0_38 = arith.constant 0 : index
    %75 = vector.load %arg4[%c0_37, %74, %c0_38] : memref<1x64x128xbf16, #tpu.memory_space<vmem>>, vector<1x64x128xbf16>
    %76 = vector.shape_cast %75 : vector<1x64x128xbf16> to vector<64x128xbf16>
    %77 = vector.shape_cast %71 : vector<64x128xbf16> to vector<1x64x128xbf16>
    tpu.vector_store %arg4[%c0_37, %74, %c0_38], %77 {strides = array<i32>} : memref<1x64x128xbf16, #tpu.memory_space<vmem>>, vector<1x64x128xbf16>,
    %c1_i32_39 = arith.constant 1 : i32
    return
  }
  func.func @transform_0(%arg0: i32) -> (i32, i32, i32, i32) {
    %c0_i32 = arith.constant 0 : i32
    %c0_i32_0 = arith.constant 0 : i32
    %c0_i32_1 = arith.constant 0 : i32
    %c0_i32_2 = arith.constant 0 : i32
    return %arg0, %c0_i32, %c0_i32_0, %c0_i32_1 : i32, i32, i32, i32
  }
  func.func @transform_1(%arg0: i32) -> (i32, i32) {
    %c0_i32 = arith.constant 0 : i32
    %c0_i32_0 = arith.constant 0 : i32
    %c0_i32_1 = arith.constant 0 : i32
    return %c0_i32, %c0_i32_0 : i32, i32
  }
  func.func @transform_2(%arg0: i32) -> (i32, i32) {
    %c0_i32 = arith.constant 0 : i32
    %c0_i32_0 = arith.constant 0 : i32
    %c0_i32_1 = arith.constant 0 : i32
    return %c0_i32, %c0_i32_0 : i32, i32
  }
  func.func @transform_3(%arg0: i32) -> (i32, i32, i32) {
    %c0_i32 = arith.constant 0 : i32
    %c0_i32_0 = arith.constant 0 : i32
    %c0_i32_1 = arith.constant 0 : i32
    return %arg0, %c0_i32, %c0_i32_0 : i32, i32, i32
  }
}

</mosaic_0001>

<llo_original>
// kernel: downsample_forward.1
$region0: #{downsample_forward.1}
  #allocation0 [shape = 'u32[]', space=smem, size = 0x4, offset = 0x4, fixed_abs, tag = 'smem constant byte address 0x4 - core index']
  #allocation1 [shape = 'u32[144,128]{1,0:T(1,128)}', space=vmem, size = 0x12000, scoped, tag = 'internal scratch']
  %s0 = inlined_call_operand.vmem [shape: bf16[2,9,9,16], index: 0, kind: input, shape index: {}]
  %s1 = inlined_call_operand.vmem [shape: bf16[64,128], index: 1, kind: input, shape index: {}]
  %s2 = inlined_call_operand.vmem [shape: f32[1,128], index: 2, kind: input, shape index: {}]
  %s3 = inlined_call_operand.hbm [shape: bf16[2,64,128], index: 3, kind: output, shape index: {}]
  %s4 = sld [smem:[#allocation0]]
  $region45: #{downsample_forward.1} parent=0
    _
  %s6 = ssub.s32 1, %s4
  %s7 = scalar_select 0, %s6, %s4
  $region1: #{downsample_forward.1} parent=0
    #allocation2 [shape = 'u8[32768]{0}', space=vmem, size = 0x8000, scoped, tag = 'output window, operand 0']
    #allocation3 [shape = 's32[2]{0}', space=sflag, size = 0x8, scoped, tag = 'scoped memory for downsample_forward.1']
    %8 = vsyncpa [#allocation3], 0
    %s9 = scalar_lea.sflag [#allocation3], 1
    %10 = vsyncpa %s9, 0
    loop: start=0, step=1, limit=4
    $region2: #{downsample_forward.1} parent=1 // loop_pre_header
      _
    $region3: #{downsample_forward.1} parent=1 // loop_header
      %s12 = sphi 0, %s16
      %p13 = scmp.ge.s32.totalorder %s12, 4
      %s22 = sphi 0, %s24
      %s25 = sphi 0, %s22
      %s26 = sphi 0, %s25
      %s42 = sphi 0, %s26
      %s46 = sphi 0, %s46
      %s48 = sphi 0, %s46
      %s49 = sphi 0, %s48
      %s63 = sphi 0, %s49
      %s67 = sphi 0, %s67
      %s69 = sphi 0, %s67
      %s70 = sphi 0, %s69
      %s84 = sphi 0, %s70
      %s90 = sphi 0, %s92
      %s93 = sphi 0, %s90
      %s94 = sphi 0, %s93
      %s110 = sphi 0, %s94
    $region4: #{downsample_forward.1} parent=1 // loop_header_branch
      %15 = sbr.rel (%p13) target = $region8
    $region5: #{downsample_forward.1} parent=1 // loop_body
      %s17 = ssub.s32 %s12, 1
      %s18 = ssub.s32 %s12, 2
      %s19 = sadd.s32 %s12, 1
      %s20 = ssub.s32 %s12, %s19
      %p21 = scmp.eq.s32.totalorder %s20, 0
      %s23 = sadd.s32 %s22, 1
      %s24 = scalar_select %p21, %s22, %s23
      %p27 = pneg %p21
      %p28 = scmp.eq.s32.totalorder %s12, 1
      %p29 = por %p27, %p28
      %p30 = scmp.ne.s32.totalorder %s22, %s25
      %p31 = scmp.eq.s32.totalorder %s12, 0
      %p32 = por %p30, %p31
      %p33 = scmp.ne.s32.totalorder %s22, %s25
      %p34 = scmp.eq.s32.totalorder %s17, 1
      %p35 = por %p33, %p34
      %p36 = scmp.ne.s32.totalorder %s25, %s26
      %p37 = scmp.eq.s32.totalorder %s17, 0
      %p38 = por %p36, %p37
      %p39 = scmp.ne.s32.totalorder %s25, %s26
      %p40 = scmp.eq.s32.totalorder %s18, 1
      %p41 = por %p39, %p40
      %p43 = scmp.ne.s32.totalorder %s26, %s42
      %p44 = scmp.eq.s32.totalorder %s18, 0
      %p45 = por %p43, %p44
      %s47 = sadd.s32 %s46, 1
      %p50 = scmp.eq.s32.totalorder %s12, 1
      %p51 = scmp.ne.s32.totalorder %s46, %s48
      %p52 = scmp.eq.s32.totalorder %s12, 0
      %p53 = por %p51, %p52
      %p54 = scmp.ne.s32.totalorder %s46, %s48
      %p55 = scmp.eq.s32.totalorder %s17, 1
      %p56 = por %p54, %p55
      %p57 = scmp.ne.s32.totalorder %s48, %s49
      %p58 = scmp.eq.s32.totalorder %s17, 0
      %p59 = por %p57, %p58
      %p60 = scmp.ne.s32.totalorder %s48, %s49
      %p61 = scmp.eq.s32.totalorder %s18, 1
      %p62 = por %p60, %p61
      %p64 = scmp.ne.s32.totalorder %s49, %s63
      %p65 = scmp.eq.s32.totalorder %s18, 0
      %p66 = por %p64, %p65
      %s68 = sadd.s32 %s67, 1
      %p71 = scmp.eq.s32.totalorder %s12, 1
      %p72 = scmp.ne.s32.totalorder %s67, %s69
      %p73 = scmp.eq.s32.totalorder %s12, 0
      %p74 = por %p72, %p73
      %p75 = scmp.ne.s32.totalorder %s67, %s69
      %p76 = scmp.eq.s32.totalorder %s17, 1
      %p77 = por %p75, %p76
      %p78 = scmp.ne.s32.totalorder %s69, %s70
      %p79 = scmp.eq.s32.totalorder %s17, 0
      %p80 = por %p78, %p79
      %p81 = scmp.ne.s32.totalorder %s69, %s70
      %p82 = scmp.eq.s32.totalorder %s18, 1
      %p83 = por %p81, %p82
      %p85 = scmp.ne.s32.totalorder %s70, %s84
      %p86 = scmp.eq.s32.totalorder %s18, 0
      %p87 = por %p85, %p86
      %s88 = ssub.s32 %s12, %s19
      %p89 = scmp.eq.s32.totalorder %s88, 0
      %s91 = sadd.s32 %s90, 1
      %s92 = scalar_select %p89, %s90, %s91
      %p95 = pneg %p89
      %p96 = scmp.eq.s32.totalorder %s12, 1
      %p97 = por %p95, %p96
      %p98 = scmp.ne.s32.totalorder %s90, %s93
      %p99 = scmp.eq.s32.totalorder %s12, 0
      %p100 = por %p98, %p99
      %p101 = scmp.ne.s32.totalorder %s90, %s93
      %p102 = scmp.eq.s32.totalorder %s17, 1
      %p103 = por %p101, %p102
      %p104 = scmp.ne.s32.totalorder %s93, %s94
      %p105 = scmp.eq.s32.totalorder %s17, 0
      %p106 = por %p104, %p105
      %p107 = scmp.ne.s32.totalorder %s93, %s94
      %p108 = scmp.eq.s32.totalorder %s18, 1
      %p109 = por %p107, %p108
      %p111 = scmp.ne.s32.totalorder %s94, %s110
      %p112 = scmp.eq.s32.totalorder %s18, 0
      %p113 = por %p111, %p112
      %p114 = scmp.le.s32.totalorder 1, %s12
      %p115 = scmp.lt.s32.totalorder %s12, 3
      %p116 = pnand %p114, %p115
      %p117 = pneg %p116
      // Predicated region
      $region9: #{downsample_forward.1} parent=5 // pred_check
        _
      $region10: #{downsample_forward.1} parent=5 // pred_check_branch
        %119 = sbr.rel (%p116) target = $region12
      $region11: #{downsample_forward.1} parent=5 // pred_region
        %s120 = ssub.s32 %s12, 1
        // Predicated region
        $region13: #{downsample_forward.1} parent=11 // pred_check
          %p121 = pneg %p59
        $region14: #{downsample_forward.1} parent=11 // pred_check_branch
          %123 = sbr.rel (%p121) target = $region16
        $region15: #{downsample_forward.1} parent=11 // pred_region
          _
        $region16: #{downsample_forward.1} parent=11 // pred_fallthru
          _
        // Predicated region
        $region17: #{downsample_forward.1} parent=11 // pred_check
          %p124 = pneg %p80
        $region18: #{downsample_forward.1} parent=11 // pred_check_branch
          %126 = sbr.rel (%p124) target = $region20
        $region19: #{downsample_forward.1} parent=11 // pred_region
          _
        $region20: #{downsample_forward.1} parent=11 // pred_fallthru
          _
      $region12: #{downsample_forward.1} parent=5 // pred_fallthru
        _
      %p127 = scmp.lt.s32.totalorder %s12, 2
      // Predicated region
      $region21: #{downsample_forward.1} parent=5 // pred_check
        %p128 = pneg %p127
      $region22: #{downsample_forward.1} parent=5 // pred_check_branch
        %130 = sbr.rel (%p128) target = $region24
      $region23: #{downsample_forward.1} parent=5 // pred_region
        // Predicated region
        $region25: #{downsample_forward.1} parent=23 // pred_check
          %p131 = pneg %p32
        $region26: #{downsample_forward.1} parent=23 // pred_check_branch
          %133 = sbr.rel (%p131) target = $region28
        $region27: #{downsample_forward.1} parent=23 // pred_region
          %p134 = scmp.lt.s32.totalorder %s12, 1
          %s135 = scalar_select %p134, %s12, 1
          %s136 = smul.addr %s135, 18
          %s137 = smul.addr %s136, 4
          %s138 = scalar_lea.vmem %s0, %s137
        $region28: #{downsample_forward.1} parent=23 // pred_fallthru
          _
      $region24: #{downsample_forward.1} parent=5 // pred_fallthru
        _
      %p139 = scmp.le.s32.totalorder 1, %s12
      %p140 = scmp.lt.s32.totalorder %s12, 3
      %p141 = pnand %p139, %p140
      %p142 = pneg %p141
      // Predicated region
      $region29: #{downsample_forward.1} parent=5 // pred_check
        _
      $region30: #{downsample_forward.1} parent=5 // pred_check_branch
        %144 = sbr.rel (%p141) target = $region32
      $region31: #{downsample_forward.1} parent=5 // pred_region
        %s145 = ssub.s32 %s12, 1
        %p146 = scmp.lt.s32.totalorder %s17, 1
        %s147 = scalar_select %p146, %s17, 1
        %s148 = smul.addr %s147, 18
        %s149 = smul.addr %s148, 4
        %s150 = scalar_lea.vmem %s0, %s149
        %p151 = pneg %p38
        %p152 = pneg %p35
        %p153 = pneg %p59
        %p154 = pneg %p56
        %p155 = pneg %p80
        %p156 = pneg %p77
        %p157 = pneg %p106
        %p158 = pneg %p103
        %s159 = sand.u32 %s93, 1
        %s160 = scalar_lea.sflag [#allocation3], %s159
        %s161 = sand.u32 %s93, 1
        %s162 = smul.addr %s161, 32
        %s163 = scalar_lea.vmem [#allocation2], %s162
        %p164 = scmp.lt.s32.totalorder %s17, 1
        %s165 = scalar_select %p164, %s17, 1
        %s166 = smul.addr %s165, 18
        %s167 = smul.addr %s166, 4
        %s168 = scalar_lea.vmem %s0, %s167
        %v170 = vld [vmem:[%s168] sm:$0xf]
        %v171 = vld [vmem:[%s168 + $0x8] sm:$0xf]
        %v172 = vld [vmem:[%s168 + $0x10] sm:$0xf]
        %v173 = vld [vmem:[%s168 + $0x18] sm:$0xf]
        %v174 = vld [vmem:[%s168 + $0x20] sm:$0xf]
        %v175 = vld [vmem:[%s168 + $0x28] sm:$0xf]
        %v176 = vld [vmem:[%s168 + $0x30] sm:$0xf]
        %v177 = vld [vmem:[%s168 + $0x38] sm:$0xf]
        %v178 = vld [vmem:[%s168 + $0x4] sm:$0x1]
        %v179 = vld [vmem:[%s168 + $0xc] sm:$0x1]
        %v180 = vld [vmem:[%s168 + $0x14] sm:$0x1]
        %v181 = vld [vmem:[%s168 + $0x1c] sm:$0x1]
        %v182 = vld [vmem:[%s168 + $0x24] sm:$0x1]
        %v183 = vld [vmem:[%s168 + $0x2c] sm:$0x1]
        %v184 = vld [vmem:[%s168 + $0x34] sm:$0x1]
        %v185 = vld [vmem:[%s168 + $0x3c] sm:$0x1]
        %vm186 = vsmask.f32 3328
        %vm187 = vsmask.f32 7440
        %vm188 = vmor %vm186, %vm187
        %v190 = vshrl.u32 %v170, 16
        %v192 = vrot.slane %v190, 4
        %v193 = vshll.u32 %v170, 16
        %v195 = vrot.slane %v193, 5
        %v196 = vor.u32 %v192, %v195
        %v197 = vrot.slane %v196, 4
        %v199 = vshll.u32 %v178, 16
        %v201 = vrot.slane %v199, 5
        %v202 = vsel %vm188, %v197, %v201
        %v204 = vshrl.u32 %v171, 16
        %v206 = vrot.slane %v204, 4
        %v207 = vshll.u32 %v171, 16
        %v209 = vrot.slane %v207, 5
        %v210 = vor.u32 %v206, %v209
        %v211 = vrot.slane %v210, 4
        %v213 = vshll.u32 %v179, 16
        %v215 = vrot.slane %v213, 5
        %v216 = vsel %vm188, %v211, %v215
        %v218 = vshrl.u32 %v172, 16
        %v220 = vrot.slane %v218, 4
        %v221 = vshll.u32 %v172, 16
        %v223 = vrot.slane %v221, 5
        %v224 = vor.u32 %v220, %v223
        %v225 = vrot.slane %v224, 4
        %v227 = vshll.u32 %v180, 16
        %v229 = vrot.slane %v227, 5
        %v230 = vsel %vm188, %v225, %v229
        %v232 = vshrl.u32 %v173, 16
        %v234 = vrot.slane %v232, 4
        %v235 = vshll.u32 %v173, 16
        %v237 = vrot.slane %v235, 5
        %v238 = vor.u32 %v234, %v237
        %v239 = vrot.slane %v238, 4
        %v241 = vshll.u32 %v181, 16
        %v243 = vrot.slane %v241, 5
        %v244 = vsel %vm188, %v239, %v243
        %v246 = vshrl.u32 %v174, 16
        %v248 = vrot.slane %v246, 4
        %v249 = vshll.u32 %v174, 16
        %v251 = vrot.slane %v249, 5
        %v252 = vor.u32 %v248, %v251
        %v253 = vrot.slane %v252, 4
        %v255 = vshll.u32 %v182, 16
        %v257 = vrot.slane %v255, 5
        %v258 = vsel %vm188, %v253, %v257
        %v260 = vshrl.u32 %v175, 16
        %v262 = vrot.slane %v260, 4
        %v263 = vshll.u32 %v175, 16
        %v265 = vrot.slane %v263, 5
        %v266 = vor.u32 %v262, %v265
        %v267 = vrot.slane %v266, 4
        %v269 = vshll.u32 %v183, 16
        %v271 = vrot.slane %v269, 5
        %v272 = vsel %vm188, %v267, %v271
        %v274 = vshrl.u32 %v176, 16
        %v276 = vrot.slane %v274, 4
        %v277 = vshll.u32 %v176, 16
        %v279 = vrot.slane %v277, 5
        %v280 = vor.u32 %v276, %v279
        %v281 = vrot.slane %v280, 4
        %v283 = vshll.u32 %v184, 16
        %v285 = vrot.slane %v283, 5
        %v286 = vsel %vm188, %v281, %v285
        %v288 = vshrl.u32 %v177, 16
        %v290 = vrot.slane %v288, 4
        %v291 = vshll.u32 %v177, 16
        %v293 = vrot.slane %v291, 5
        %v294 = vor.u32 %v290, %v293
        %v295 = vrot.slane %v294, 4
        %v297 = vshll.u32 %v185, 16
        %v299 = vrot.slane %v297, 5
        %v300 = vsel %vm188, %v295, %v299
        %s301 = scalar_lea.vmem %s168, 8
        %v302 = vld [vmem:[%s301] sm:$0xf]
        %v303 = vld [vmem:[%s301 + $0x8] sm:$0xf]
        %v304 = vld [vmem:[%s301 + $0x10] sm:$0xf]
        %v305 = vld [vmem:[%s301 + $0x18] sm:$0xf]
        %v306 = vld [vmem:[%s301 + $0x20] sm:$0xf]
        %v307 = vld [vmem:[%s301 + $0x28] sm:$0xf]
        %v308 = vld [vmem:[%s301 + $0x30] sm:$0xf]
        %v309 = vld [vmem:[%s301 + $0x38] sm:$0xf]
        %v310 = vld [vmem:[%s301 + $0x4] sm:$0x1]
        %v311 = vld [vmem:[%s301 + $0xc] sm:$0x1]
        %v312 = vld [vmem:[%s301 + $0x14] sm:$0x1]
        %v313 = vld [vmem:[%s301 + $0x1c] sm:$0x1]
        %v314 = vld [vmem:[%s301 + $0x24] sm:$0x1]
        %v315 = vld [vmem:[%s301 + $0x2c] sm:$0x1]
        %v316 = vld [vmem:[%s301 + $0x34] sm:$0x1]
        %v317 = vld [vmem:[%s301 + $0x3c] sm:$0x1]
        %v319 = vshrl.u32 %v302, 16
        %v321 = vrot.slane %v319, 4
        %v322 = vshll.u32 %v302, 16
        %v324 = vrot.slane %v322, 5
        %v325 = vor.u32 %v321, %v324
        %v326 = vrot.slane %v325, 4
        %v328 = vshll.u32 %v310, 16
        %v330 = vrot.slane %v328, 5
        %v331 = vsel %vm188, %v326, %v330
        %v333 = vshrl.u32 %v303, 16
        %v335 = vrot.slane %v333, 4
        %v336 = vshll.u32 %v303, 16
        %v338 = vrot.slane %v336, 5
        %v339 = vor.u32 %v335, %v338
        %v340 = vrot.slane %v339, 4
        %v342 = vshll.u32 %v311, 16
        %v344 = vrot.slane %v342, 5
        %v345 = vsel %vm188, %v340, %v344
        %v347 = vshrl.u32 %v304, 16
        %v349 = vrot.slane %v347, 4
        %v350 = vshll.u32 %v304, 16
        %v352 = vrot.slane %v350, 5
        %v353 = vor.u32 %v349, %v352
        %v354 = vrot.slane %v353, 4
        %v356 = vshll.u32 %v312, 16
        %v358 = vrot.slane %v356, 5
        %v359 = vsel %vm188, %v354, %v358
        %v361 = vshrl.u32 %v305, 16
        %v363 = vrot.slane %v361, 4
        %v364 = vshll.u32 %v305, 16
        %v366 = vrot.slane %v364, 5
        %v367 = vor.u32 %v363, %v366
        %v368 = vrot.slane %v367, 4
        %v370 = vshll.u32 %v313, 16
        %v372 = vrot.slane %v370, 5
        %v373 = vsel %vm188, %v368, %v372
        %v375 = vshrl.u32 %v306, 16
        %v377 = vrot.slane %v375, 4
        %v378 = vshll.u32 %v306, 16
        %v380 = vrot.slane %v378, 5
        %v381 = vor.u32 %v377, %v380
        %v382 = vrot.slane %v381, 4
        %v384 = vshll.u32 %v314, 16
        %v386 = vrot.slane %v384, 5
        %v387 = vsel %vm188, %v382, %v386
        %v389 = vshrl.u32 %v307, 16
        %v391 = vrot.slane %v389, 4
        %v392 = vshll.u32 %v307, 16
        %v394 = vrot.slane %v392, 5
        %v395 = vor.u32 %v391, %v394
        %v396 = vrot.slane %v395, 4
        %v398 = vshll.u32 %v315, 16
        %v400 = vrot.slane %v398, 5
        %v401 = vsel %vm188, %v396, %v400
        %v403 = vshrl.u32 %v308, 16
        %v405 = vrot.slane %v403, 4
        %v406 = vshll.u32 %v308, 16
        %v408 = vrot.slane %v406, 5
        %v409 = vor.u32 %v405, %v408
        %v410 = vrot.slane %v409, 4
        %v412 = vshll.u32 %v316, 16
        %v414 = vrot.slane %v412, 5
        %v415 = vsel %vm188, %v410, %v414
        %v417 = vshrl.u32 %v309, 16
        %v419 = vrot.slane %v417, 4
        %v420 = vshll.u32 %v309, 16
        %v422 = vrot.slane %v420, 5
        %v423 = vor.u32 %v419, %v422
        %v424 = vrot.slane %v423, 4
        %v426 = vshll.u32 %v317, 16
        %v428 = vrot.slane %v426, 5
        %v429 = vsel %vm188, %v424, %v428
        %v438 = vunpack.c.l.b16 %v170
        %v439 = vunpack.c.l.b16 %v171
        %v440 = vunpack.c.l.b16 %v172
        %v441 = vunpack.c.l.b16 %v173
        %v442 = vunpack.c.l.b16 %v174
        %v443 = vunpack.c.l.b16 %v175
        %v444 = vunpack.c.l.b16 %v176
        %v445 = vunpack.c.l.b16 %v177
        %v446 = vpack.c.b16 %v439, %v438
        %v447 = vpack.c.b16 %v441, %v440
        %v448 = vpack.c.b16 %v443, %v442
        %v449 = vpack.c.b16 %v445, %v444
        %v450 = vunpack.c.l.b16 %v202
        %v451 = vunpack.c.l.b16 %v216
        %v452 = vunpack.c.l.b16 %v230
        %v453 = vunpack.c.l.b16 %v244
        %v454 = vunpack.c.l.b16 %v258
        %v455 = vunpack.c.l.b16 %v272
        %v456 = vunpack.c.l.b16 %v286
        %v457 = vunpack.c.l.b16 %v300
        %v458 = vpack.c.b16 %v451, %v450
        %v459 = vpack.c.b16 %v453, %v452
        %v460 = vpack.c.b16 %v455, %v454
        %v461 = vpack.c.b16 %v457, %v456
        %462 = vrot.lane.b32.xlu0 %v458, 16
        %v463 = vpop.permute.xlu0 %462
        %464 = vrot.lane.b32.xlu0 %v459, 16
        %v465 = vpop.permute.xlu0 %464
        %466 = vrot.lane.b32.xlu0 %v460, 16
        %v467 = vpop.permute.xlu0 %466
        %468 = vrot.lane.b32.xlu0 %v461, 16
        %v469 = vpop.permute.xlu0 %468
        %v478 = vunpack.c.l.b16 %v302
        %v479 = vunpack.c.l.b16 %v303
        %v480 = vunpack.c.l.b16 %v304
        %v481 = vunpack.c.l.b16 %v305
        %v482 = vunpack.c.l.b16 %v306
        %v483 = vunpack.c.l.b16 %v307
        %v484 = vunpack.c.l.b16 %v308
        %v485 = vunpack.c.l.b16 %v309
        %v486 = vpack.c.b16 %v479, %v478
        %v487 = vpack.c.b16 %v481, %v480
        %v488 = vpack.c.b16 %v483, %v482
        %v489 = vpack.c.b16 %v485, %v484
        %490 = vrot.lane.b32.xlu0 %v486, 32
        %v491 = vpop.permute.xlu0 %490
        %492 = vrot.lane.b32.xlu0 %v487, 32
        %v493 = vpop.permute.xlu0 %492
        %494 = vrot.lane.b32.xlu0 %v488, 32
        %v495 = vpop.permute.xlu0 %494
        %496 = vrot.lane.b32.xlu0 %v489, 32
        %v497 = vpop.permute.xlu0 %496
        %v498 = vunpack.c.l.b16 %v331
        %v499 = vunpack.c.l.b16 %v345
        %v500 = vunpack.c.l.b16 %v359
        %v501 = vunpack.c.l.b16 %v373
        %v502 = vunpack.c.l.b16 %v387
        %v503 = vunpack.c.l.b16 %v401
        %v504 = vunpack.c.l.b16 %v415
        %v505 = vunpack.c.l.b16 %v429
        %v506 = vpack.c.b16 %v499, %v498
        %v507 = vpack.c.b16 %v501, %v500
        %v508 = vpack.c.b16 %v503, %v502
        %v509 = vpack.c.b16 %v505, %v504
        %510 = vrot.lane.b32.xlu0 %v506, 48
        %v511 = vpop.permute.xlu0 %510
        %512 = vrot.lane.b32.xlu0 %v507, 48
        %v513 = vpop.permute.xlu0 %512
        %514 = vrot.lane.b32.xlu0 %v508, 48
        %v515 = vpop.permute.xlu0 %514
        %516 = vrot.lane.b32.xlu0 %v509, 48
        %v517 = vpop.permute.xlu0 %516
        %vm518 = vcmask 130048
        %v521 = vsel %vm518, %v446, %v463
        %v524 = vsel %vm518, %v447, %v465
        %v527 = vsel %vm518, %v448, %v467
        %v530 = vsel %vm518, %v449, %v469
        %vm531 = vcmask 261120
        %v533 = vsel %vm531, %v521, %v491
        %v535 = vsel %vm531, %v524, %v493
        %v537 = vsel %vm531, %v527, %v495
        %v539 = vsel %vm531, %v530, %v497
        %vm540 = vcmask 392192
        %v542 = vsel %vm540, %v533, %v511
        %v544 = vsel %vm540, %v535, %v513
        %v546 = vsel %vm540, %v537, %v515
        %v548 = vsel %vm540, %v539, %v517
        %v549 = vld [vmem:[%s1] sm:$0xf]
        %v550 = vld [vmem:[%s1 + $0x4] sm:$0xf]
        %v551 = vld [vmem:[%s1 + $0x8] sm:$0xf]
        %v552 = vld [vmem:[%s1 + $0xc] sm:$0xf]
        %v553 = vld [vmem:[%s1 + $0x10] sm:$0xf]
        %v554 = vld [vmem:[%s1 + $0x14] sm:$0xf]
        %v555 = vld [vmem:[%s1 + $0x18] sm:$0xf]
        %v556 = vld [vmem:[%s1 + $0x1c] sm:$0xf]
        %v557 = vld [vmem:[%s2] sm:$0x1]
        %v559 = vlaneseq
        %v560 = vshrl.u32 %v559, 7
        %v561 = vsub.s32 0, %v560
        %v562 = vrot.slane %v557, %v561
        %v572 = vunpack.c.l.b16 %v549
        %v573 = vunpack.c.l.b16 %v550
        %v574 = vunpack.c.l.b16 %v551
        %v575 = vunpack.c.l.b16 %v552
        %v576 = vunpack.c.l.b16 %v553
        %v577 = vunpack.c.l.b16 %v554
        %v578 = vunpack.c.l.b16 %v555
        %v579 = vunpack.c.l.b16 %v556
        %v580 = vpack.c.b16 %v573, %v572
        %v581 = vpack.c.b16 %v575, %v574
        %v582 = vpack.c.b16 %v577, %v576
        %v583 = vpack.c.b16 %v579, %v578
        %vm588 = vcmask 523264
        %v589 = vsel %vm588, %v542, 0
        %v591 = vsel %vm588, %v544, 0
        %v593 = vsel %vm588, %v546, 0
        %v595 = vsel %vm588, %v548, 0
        %597 = vmatprep.subr.bf16.mxu0 0
        %598 = vmatpush1.bf16.msra.mxu0 %v580
        %599 = vmatprep.subr.bf16.mxu0 0
        %600 = vmatpush1.bf16.msra.mxu0 %v581
        %601 = vmatprep.subr.bf16.mxu0 0
        %602 = vmatpush1.bf16.msra.mxu0 %v582
        %603 = vmatprep.subr.bf16.mxu0 0
        %604 = vmatpush1.bf16.msra.mxu0 %v583
        %605 = vmatprep.subr.bf16.mxu0 0
        %606 = vmatpush1.bf16.msra.mxu0 0
        %607 = vmatprep.subr.bf16.mxu0 0
        %608 = vmatpush1.bf16.msra.mxu0 0
        %609 = vmatprep.subr.bf16.mxu0 0
        %610 = vmatpush1.bf16.msra.mxu0 0
        %611 = vmatprep.subr.bf16.mxu0 0
        %612 = vmatpush1.bf16.msra.mxu0 0
        %613 = vmatprep.subr.bf16.mxu0 0
        %614 = vmatpush1.bf16.msra.mxu0 0
        %615 = vmatprep.subr.bf16.mxu0 0
        %616 = vmatpush1.bf16.msra.mxu0 0
        %617 = vmatprep.subr.bf16.mxu0 0
        %618 = vmatpush1.bf16.msra.mxu0 0
        %619 = vmatprep.subr.bf16.mxu0 0
        %620 = vmatpush1.bf16.msra.mxu0 0
        %621 = vmatprep.subr.bf16.mxu0 0
        %622 = vmatpush1.bf16.msra.mxu0 0
        %623 = vmatprep.subr.bf16.mxu0 0
        %624 = vmatpush1.bf16.msra.mxu0 0
        %625 = vmatprep.subr.bf16.mxu0 0
        %626 = vmatpush1.bf16.msra.mxu0 0
        %627 = vmatprep.subr.bf16.mxu0 0
        %628 = vmatpush1.bf16.msra.mxu0 0
        %629 = vmatprep.mubr.bf16.mxu0 0
        %630 = vmatmul.mubr.bf16.gmra.mrb[0].mxu0 %v589
        %v631 = vpop.f32.mrb[0].mxu0
        %v632 = vadd.f32 %v562, %v631
        %v633 = vpop.f32.mrb[0].mxu0
        %v634 = vpop.f32.mrb[0].mxu0
        %v635 = vadd.f32 %v562, %v634
        %v636 = vpop.f32.mrb[0].mxu0
        %637 = vmatprep.mubr.bf16.mxu0 0
        %638 = vmatmul.mubr.bf16.gmra.mrb[0].mxu0 %v591
        %v639 = vpop.f32.mrb[0].mxu0
        %v640 = vadd.f32 %v562, %v639
        %v641 = vpop.f32.mrb[0].mxu0
        %v642 = vpop.f32.mrb[0].mxu0
        %v643 = vadd.f32 %v562, %v642
        %v644 = vpop.f32.mrb[0].mxu0
        %645 = vmatprep.mubr.bf16.mxu0 0
        %646 = vmatmul.mubr.bf16.gmra.mrb[0].mxu0 %v593
        %v647 = vpop.f32.mrb[0].mxu0
        %v648 = vadd.f32 %v562, %v647
        %v649 = vpop.f32.mrb[0].mxu0
        %v650 = vpop.f32.mrb[0].mxu0
        %v651 = vadd.f32 %v562, %v650
        %v652 = vpop.f32.mrb[0].mxu0
        %653 = vmatprep.mubr.bf16.mxu0 0
        %654 = vmatmul.mubr.bf16.gmra.mrb[0].mxu0 %v595
        %v655 = vpop.f32.mrb[0].mxu0
        %v656 = vadd.f32 %v562, %v655
        %v657 = vpop.f32.mrb[0].mxu0
        %v658 = vpop.f32.mrb[0].mxu0
        %v659 = vadd.f32 %v562, %v658
        %v660 = vpop.f32.mrb[0].mxu0
        %661 = vdwg.mxu0
        %v662 = vmul.f32 %v632, 0.01
        %v663 = vmul.f32 %v635, 0.01
        %v664 = vmul.f32 %v640, 0.01
        %v665 = vmul.f32 %v643, 0.01
        %v666 = vmul.f32 %v648, 0.01
        %v667 = vmul.f32 %v651, 0.01
        %v668 = vmul.f32 %v656, 0.01
        %v669 = vmul.f32 %v659, 0.01
        %v670 = vmax.f32 %v632, %v662
        %v671 = vmax.f32 %v635, %v663
        %v672 = vmax.f32 %v640, %v664
        %v673 = vmax.f32 %v643, %v665
        %v674 = vmax.f32 %v648, %v666
        %v675 = vmax.f32 %v651, %v667
        %v676 = vmax.f32 %v656, %v668
        %v677 = vmax.f32 %v659, %v669
        %v678 = vpack.c.bf16 %v671, %v670
        %v679 = vpack.c.bf16 %v673, %v672
        %v680 = vpack.c.bf16 %v675, %v674
        %v681 = vpack.c.bf16 %v677, %v676
        %v686 = vunpack.c.l.b16 %v678
        %v687 = vunpack.c.h.b16 %v678
        %v688 = vunpack.c.l.b16 %v679
        %v689 = vunpack.c.h.b16 %v679
        %v690 = vunpack.c.l.b16 %v680
        %v691 = vunpack.c.h.b16 %v680
        %v692 = vunpack.c.l.b16 %v681
        %v693 = vunpack.c.h.b16 %v681
        %v694 = vpack.c.b16 %v686, %v686
        %v695 = vpack.c.b16 %v687, %v687
        %v696 = vpack.c.b16 %v688, %v688
        %v697 = vpack.c.b16 %v689, %v689
        %v698 = vpack.c.b16 %v690, %v690
        %v699 = vpack.c.b16 %v691, %v691
        %v700 = vpack.c.b16 %v692, %v692
        %v701 = vpack.c.b16 %v693, %v693
        %710 = vst [vmem:[%s163] sm:$0xf] %v694
        %711 = vst [vmem:[%s163 + $0x4] sm:$0xf] %v695
        %712 = vst [vmem:[%s163 + $0x8] sm:$0xf] %v696
        %713 = vst [vmem:[%s163 + $0xc] sm:$0xf] %v697
        %714 = vst [vmem:[%s163 + $0x10] sm:$0xf] %v698
        %715 = vst [vmem:[%s163 + $0x14] sm:$0xf] %v699
        %716 = vst [vmem:[%s163 + $0x18] sm:$0xf] %v700
        %717 = vst [vmem:[%s163 + $0x1c] sm:$0xf] %v701
        %v718 = vunpack.c.l.bf16 %v678
        %v719 = vunpack.c.h.bf16 %v678
        %v720 = vunpack.c.l.bf16 %v679
        %v721 = vunpack.c.h.bf16 %v679
        %v722 = vunpack.c.l.bf16 %v680
        %v723 = vunpack.c.h.bf16 %v680
        %v724 = vunpack.c.l.bf16 %v681
        %v725 = vunpack.c.h.bf16 %v681
        %v726 = vadd.f32 %v718, %v719
        %v727 = vadd.f32 %v726, %v720
        %v728 = vadd.f32 %v727, %v721
        %v729 = vadd.f32 %v728, %v722
        %v730 = vadd.f32 %v729, %v723
        %v731 = vadd.f32 %v730, %v724
        %v732 = vadd.f32 %v731, %v725
        %v733 = vrot.slane %v732, 4
        %v734 = vadd.f32 %v732, %v733
        %v735 = vrot.slane %v734, 2
        %v736 = vadd.f32 %v734, %v735
        %v737 = vrot.slane %v736, 1
        %v738 = vadd.f32 %v736, %v737
        %v739 = vadd.f32 %v738, 0.0
        %v740 = vmul.f32 %v739, 0.015625
        %v741 = vld [vmem:[%s163] sm:$0xf]
        %v742 = vld [vmem:[%s163 + $0x4] sm:$0xf]
        %v743 = vld [vmem:[%s163 + $0x8] sm:$0xf]
        %v744 = vld [vmem:[%s163 + $0xc] sm:$0xf]
        %v745 = vld [vmem:[%s163 + $0x10] sm:$0xf]
        %v746 = vld [vmem:[%s163 + $0x14] sm:$0xf]
        %v747 = vld [vmem:[%s163 + $0x18] sm:$0xf]
        %v748 = vld [vmem:[%s163 + $0x1c] sm:$0xf]
        %v749 = vunpack.c.l.bf16 %v741
        %v750 = vunpack.c.l.bf16 %v742
        %v751 = vunpack.c.l.bf16 %v743
        %v752 = vunpack.c.l.bf16 %v744
        %v753 = vunpack.c.l.bf16 %v745
        %v754 = vunpack.c.l.bf16 %v746
        %v755 = vunpack.c.l.bf16 %v747
        %v756 = vunpack.c.l.bf16 %v748
        %v757 = vsub.f32 %v749, %v740
        %v758 = vsub.f32 %v750, %v740
        %v759 = vsub.f32 %v751, %v740
        %v760 = vsub.f32 %v752, %v740
        %v761 = vsub.f32 %v753, %v740
        %v762 = vsub.f32 %v754, %v740
        %v763 = vsub.f32 %v755, %v740
        %v764 = vsub.f32 %v756, %v740
        %v765 = vmul.f32 %v757, %v757
        %v766 = vmul.f32 %v758, %v758
        %v767 = vmul.f32 %v759, %v759
        %v768 = vmul.f32 %v760, %v760
        %v769 = vmul.f32 %v761, %v761
        %v770 = vmul.f32 %v762, %v762
        %v771 = vmul.f32 %v763, %v763
        %v772 = vmul.f32 %v764, %v764
        %v773 = vadd.f32 %v765, %v766
        %v774 = vadd.f32 %v773, %v767
        %v775 = vadd.f32 %v774, %v768
        %v776 = vadd.f32 %v775, %v769
        %v777 = vadd.f32 %v776, %v770
        %v778 = vadd.f32 %v777, %v771
        %v779 = vadd.f32 %v778, %v772
        %v780 = vrot.slane %v779, 4
        %v781 = vadd.f32 %v779, %v780
        %v782 = vrot.slane %v781, 2
        %v783 = vadd.f32 %v781, %v782
        %v784 = vrot.slane %v783, 1
        %v785 = vadd.f32 %v783, %v784
        %v786 = vadd.f32 %v785, 0.0
        %v787 = vmul.f32 %v786, 0.015625
        %v788 = vadd.f32 %v787, 1e-05
        %v789 = vrsqrt.pop %v788
        %v790 = vmul.f32 %v757, %v789
        %v791 = vmul.f32 %v758, %v789
        %v792 = vmul.f32 %v759, %v789
        %v793 = vmul.f32 %v760, %v789
        %v794 = vmul.f32 %v761, %v789
        %v795 = vmul.f32 %v762, %v789
        %v796 = vmul.f32 %v763, %v789
        %v797 = vmul.f32 %v764, %v789
        %v798 = vpack.c.bf16 %v791, %v790
        %v799 = vpack.c.bf16 %v793, %v792
        %v800 = vpack.c.bf16 %v795, %v794
        %v801 = vpack.c.bf16 %v797, %v796
        %v806 = vunpack.c.l.b16 %v798
        %v807 = vunpack.c.h.b16 %v798
        %v808 = vunpack.c.l.b16 %v799
        %v809 = vunpack.c.h.b16 %v799
        %v810 = vunpack.c.l.b16 %v800
        %v811 = vunpack.c.h.b16 %v800
        %v812 = vunpack.c.l.b16 %v801
        %v813 = vunpack.c.h.b16 %v801
        %v814 = vpack.c.b16 %v806, %v806
        %v815 = vpack.c.b16 %v807, %v807
        %v816 = vpack.c.b16 %v808, %v808
        %v817 = vpack.c.b16 %v809, %v809
        %v818 = vpack.c.b16 %v810, %v810
        %v819 = vpack.c.b16 %v811, %v811
        %v820 = vpack.c.b16 %v812, %v812
        %v821 = vpack.c.b16 %v813, %v813
        %830 = vst [vmem:[%s163] sm:$0xf] %v814
        %831 = vst [vmem:[%s163 + $0x4] sm:$0xf] %v815
        %832 = vst [vmem:[%s163 + $0x8] sm:$0xf] %v816
        %833 = vst [vmem:[%s163 + $0xc] sm:$0xf] %v817
        %834 = vst [vmem:[%s163 + $0x10] sm:$0xf] %v818
        %835 = vst [vmem:[%s163 + $0x14] sm:$0xf] %v819
        %836 = vst [vmem:[%s163 + $0x18] sm:$0xf] %v820
        %837 = vst [vmem:[%s163 + $0x1c] sm:$0xf] %v821
        %s838 = sand.u32 %s93, 1
        %s839 = scalar_lea.sflag [#allocation3], %s838
        %s840 = sand.u32 %s93, 1
        %s841 = smul.addr %s840, 32
        %s842 = scalar_lea.vmem [#allocation2], %s841
        // Predicated region
        $region33: #{downsample_forward.1} parent=31 // pred_check
          %p843 = pneg %p103
        $region34: #{downsample_forward.1} parent=31 // pred_check_branch
          %845 = sbr.rel (%p843) target = $region36
        $region35: #{downsample_forward.1} parent=31 // pred_region
          %s847 = ssub.s32 512, 512
          %848 = vsyncadd %s839, %s847
          %s849 = smul.addr %s17, 8
          %s850 = smul.addr %s849, 64
          %s851 = scalar_lea.hbm %s3, %s850
          %s852 = sshll.u32 %s842, 4
          %s853 = int_to_ptr.vmem [resolvable:$true] %s852
          %858 = dma.vmem_to_hbm [thread:$0]  %s853, 512, %s851, %s839, 64, 64, 4
        $region36: #{downsample_forward.1} parent=31 // pred_fallthru
          _
      $region32: #{downsample_forward.1} parent=5 // pred_fallthru
        _
      %p859 = scmp.le.s32.totalorder 2, %s12
      // Predicated region
      $region37: #{downsample_forward.1} parent=5 // pred_check
        %p860 = pneg %p859
      $region38: #{downsample_forward.1} parent=5 // pred_check_branch
        %862 = sbr.rel (%p860) target = $region40
      $region39: #{downsample_forward.1} parent=5 // pred_region
        %s863 = ssub.s32 %s12, 2
        // Predicated region
        $region41: #{downsample_forward.1} parent=39 // pred_check
          %p864 = pneg %p109
        $region42: #{downsample_forward.1} parent=39 // pred_check_branch
          %866 = sbr.rel (%p864) target = $region44
        $region43: #{downsample_forward.1} parent=39 // pred_region
          %s867 = sand.u32 %s94, 1
          %s868 = scalar_lea.sflag [#allocation3], %s867
          %s869 = sand.u32 %s94, 1
          %s870 = smul.addr %s869, 32
          %s871 = scalar_lea.vmem [#allocation2], %s870
          %872 = dma.done %s868, 512
        $region44: #{downsample_forward.1} parent=39 // pred_fallthru
          _
      $region40: #{downsample_forward.1} parent=5 // pred_fallthru
        _
    $region6: #{downsample_forward.1} parent=1 // loop_footer
      %s16 = sadd.s32 1, %s12
    $region7: #{downsample_forward.1} parent=1 // loop_footer_branch
      %11 = sbr.rel target = $region3
    $region8: #{downsample_forward.1} parent=1 // loop_exit
      _
    %873 = vsyncpa [#allocation3], 1
    %s874 = scalar_lea.sflag [#allocation3], 1
    %875 = vsyncpa %s874, 1

</llo_original>
